<compile_context>
chip_gen: v7x
topology: tpu7x:2x2x1
jax: 0.10.0
libtpu: 0.0.40
codegen_flags: <defaults>
</compile_context>

<pallas_src>
import jax
import jax.numpy as jnp
from jax.experimental import pallas as pl
from jax.experimental.pallas import tpu as pltpu

EPS = 1e-5  # torch.nn.LayerNorm default


def _round_up(n, m):
    return ((n + m - 1) // m) * m


def _choose_tm(M, Dp, *, target_bytes=1 << 21, tm_min=256, tm_max=2048):
    """Token tile: ~1-2 MiB of f32 activations per step, >=2 grid steps (v7x)."""
    tm = _round_up(max(target_bytes // (4 * Dp), 1), 8)
    tm = max(tm_min, min(tm, tm_max))
    tm = min(tm, _round_up(M, 8))
    if M > 8 and pl.cdiv(M, tm) < 2:
        # Keep both v7x TensorCores busy on short sequences (free on v5e/v6e).
        tm = _round_up(-(-M // 2), 8)
    return max(tm, 8)


def _make_kernel(d_true, tn, gelu_approx):
    """Fused LN -> GELU -> Linear(column block) -> +bias -> +residual."""
    inv_d = 1.0 / float(d_true)

    def kernel(x_ref, gamma_ref, beta_ref, w_ref, b_ref, o_ref, g_ref):
        j = pl.program_id(1)

        # LayerNorm + GELU once per token tile; cached in a bf16 VMEM scratch
        # and reused for every output-column block of the Linear.
        @pl.when(j == 0)
        def _():
            x = x_ref[...].astype(jnp.float32)
            # Single fused reduction pass.  Any channel padding is zero, so the
            # sums over Dp lanes equal the sums over the true D lanes.
            mean = jnp.sum(x, axis=-1, keepdims=True) * inv_d
            ex2 = jnp.sum(x * x, axis=-1, keepdims=True) * inv_d
            var = ex2 - mean * mean
            xn = (x - mean) * jax.lax.rsqrt(var + EPS)
            y = xn * gamma_ref[...] + beta_ref[...]
            # tanh GELU runs on the EUP slot; exact erf is a VPU polynomial.
            g = jax.nn.gelu(y, approximate=gelu_approx)
            g_ref[...] = g.astype(jnp.bfloat16)

        # fn = Linear(dim, dim): one output-column block on the MXU, f32 acc.
        out = jnp.dot(g_ref[...], w_ref[...], preferred_element_type=jnp.float32)
        out = out + b_ref[...]

        # Residual add with the matching column slice of the resident x tile.
        col0 = pl.multiple_of(j * tn, tn)
        x_cols = x_ref[:, pl.ds(col0, tn)].astype(jnp.float32)
        o_ref[...] = (out + x_cols).astype(o_ref.dtype)

    return kernel


def prenorm_residual(x, gamma, beta, w, b, *, gelu_approx=True, out_dtype=None):
    """x: (B, S, D).  gamma, beta, b: (D,).  w: (D, D) laid out (in, out)."""
    B, S, D = x.shape
    M = B * S
    out_dtype = x.dtype if out_dtype is None else out_dtype

    Dp = _round_up(D, 128)

    # Host-side channel padding only when D is not lane-aligned (rare path);
    # the common D % 128 == 0 case avoids the extra HBM pad/slice passes.
    if Dp != D:
        x2 = jnp.pad(x.reshape(M, D), ((0, 0), (0, Dp - D)))
        gamma2 = jnp.pad(gamma.astype(jnp.float32), (0, Dp - D)).reshape(1, Dp)
        beta2 = jnp.pad(beta.astype(jnp.float32), (0, Dp - D)).reshape(1, Dp)
        b2 = jnp.pad(b.astype(jnp.float32), (0, Dp - D)).reshape(1, Dp)
        w2 = jnp.pad(w.astype(jnp.bfloat16), ((0, Dp - D), (0, Dp - D)))
    else:
        x2 = x.reshape(M, D)
        gamma2 = gamma.astype(jnp.float32).reshape(1, D)
        beta2 = beta.astype(jnp.float32).reshape(1, D)
        b2 = b.astype(jnp.float32).reshape(1, D)
        w2 = w.astype(jnp.bfloat16)

    # Adaptive token tile; ragged M handled by the grid's partial last block.
    tm = _choose_tm(M, Dp)
    grid_m = pl.cdiv(M, tm)

    # Output-column blocking of the Linear for large D (keeps weight VMEM
    # bounded at Dp*tn*2 bytes); for small D the whole weight stays resident.
    if Dp * Dp * 2 <= (12 << 20):
        tn = Dp
    else:
        tn = next(t for t in (1024, 512, 256, 128) if Dp % t == 0)
    ncol = Dp // tn

    # Generation-aware VMEM budget (v7x: 64 MiB physical per TensorCore).
    x_isz = jnp.dtype(x.dtype).itemsize
    out_isz = jnp.dtype(out_dtype).itemsize
    w_bufs = 1 if ncol == 1 else 2
    est = (2 * tm * Dp * x_isz       # x tile, double-buffered across i
           + 2 * tm * tn * out_isz   # out tile, double-buffered
           + w_bufs * Dp * tn * 2    # bf16 weight block
           + tm * Dp * 2             # bf16 g scratch
           + 2 * 2 * Dp * 4          # gamma + beta
           + 2 * tn * 4)             # bias
    try:
        vmem_phys = int(pltpu.get_tpu_info().vmem_capacity_bytes)
    except Exception:
        vmem_phys = 64 << 20  # conservative (v7x per-core VMEM)
    cap = vmem_phys - (8 << 20)
    vmem_limit = int(min(max(est + (4 << 20), 32 << 20), cap))

    def build_specs(single_buffer):
        resident = dict(pipeline_mode=pl.Buffered(1)) if single_buffer else {}
        wcol = resident if ncol == 1 else {}
        in_specs = [
            pl.BlockSpec((tm, Dp), lambda i, j: (i, 0)),              # x (resident over j)
            pl.BlockSpec((1, Dp), lambda i, j: (0, 0), **resident),   # gamma
            pl.BlockSpec((1, Dp), lambda i, j: (0, 0), **resident),   # beta
            pl.BlockSpec((Dp, tn), lambda i, j: (0, j), **wcol),      # weight column block
            pl.BlockSpec((1, tn), lambda i, j: (0, j), **wcol),       # bias column block
        ]
        out_specs = pl.BlockSpec((tm, tn), lambda i, j: (i, j))
        return in_specs, out_specs

    def run(single_buffer):
        in_specs, out_specs = build_specs(single_buffer)
        return pl.pallas_call(
            _make_kernel(D, tn, gelu_approx),
            out_shape=jax.ShapeDtypeStruct((M, Dp), out_dtype),
            grid_spec=pltpu.PrefetchScalarGridSpec(
                num_scalar_prefetch=0,
                grid=(grid_m, ncol),
                in_specs=in_specs,
                out_specs=out_specs,
                scratch_shapes=[pltpu.VMEM((tm, Dp), jnp.bfloat16)],
            ),
            compiler_params=pltpu.CompilerParams(
                dimension_semantics=("parallel", "arbitrary"),
                vmem_limit_bytes=vmem_limit),
        )(x2, gamma2, beta2, w2, b2)

    try:
        out2 = run(single_buffer=True)
    except Exception:
        # pl.Buffered(1) not supported on this JAX build: use default buffering.
        out2 = run(single_buffer=False)

    if Dp != D:
        out2 = out2[:, :D]
    return out2.reshape(B, S, D)


def reference(x, gamma, beta, w, b):
    # Pure-JAX reference: f32 LayerNorm + exact-erf GELU (torch F.gelu default),
    # bf16 matmul with f32 accumulation (matches the kernel's MXU numerics).
    xf = x.astype(jnp.float32)
    mean = jnp.mean(xf, axis=-1, keepdims=True)
    var = jnp.mean((xf - mean) ** 2, axis=-1, keepdims=True)
    xn = (xf - mean) * jax.lax.rsqrt(var + EPS)
    y = xn * gamma + beta
    g = jax.nn.gelu(y, approximate=False)
    out = jnp.einsum("bsd,de->bse",
                     g.astype(jnp.bfloat16), w.astype(jnp.bfloat16),
                     preferred_element_type=jnp.float32)
    return out + b + xf


if __name__ == "__main__":
    key = jax.random.PRNGKey(0)
    k_x, k_g, k_b, k_w, k_bias = jax.random.split(key, 5)

    # dim = 128 keeps the lane axis dense; the wrapper handles other dims by
    # padding + zero-padded params, and ragged token counts via partial blocks.
    B, S, D = 2, 8, 128

    x = jax.random.normal(k_x, (B, S, D), dtype=jnp.float32)

    # Deterministic synthetic parameters (no checkpoint load).
    gamma = jnp.ones((D,), jnp.float32) + 0.01 * jax.random.normal(k_g, (D,), jnp.float32)
    beta = 0.01 * jax.random.normal(k_b, (D,), jnp.float32)
    w = jax.random.normal(k_w, (D, D), dtype=jnp.float32) * (1.0 / jnp.sqrt(D))
    b = 0.01 * jax.random.normal(k_bias, (D,), jnp.float32)

    out = jax.block_until_ready(prenorm_residual(x, gamma, beta, w, b))

    ref = reference(x, gamma, beta, w, b)
    assert out.shape == (B, S, D)
    err = float(jnp.max(jnp.abs(out - ref)))
    assert err < 2e-2, err

    print("KERNEL_OK")
</pallas_src>

<mosaic_0001>
module attributes {stable_mosaic.version = 11 : i64} {
  func.func @kernel(%arg0: i32, %arg1: i32, %arg2: memref<8x128xf32, #tpu.memory_space<vmem>>, %arg3: memref<1x128xf32, #tpu.memory_space<vmem>>, %arg4: memref<1x128xf32, #tpu.memory_space<vmem>>, %arg5: memref<128x128xbf16, #tpu.memory_space<vmem>>, %arg6: memref<1x128xf32, #tpu.memory_space<vmem>>, %arg7: memref<8x128xf32, #tpu.memory_space<vmem>>, %arg8: memref<8x128xbf16, #tpu.memory_space<vmem>>) attributes {dimension_semantics = [#tpu.dimension_semantics<parallel>, #tpu.dimension_semantics<arbitrary>], iteration_bounds = array<i64: 2, 1>, scalar_prefetch = 0 : i64, scratch_operands = 1 : i64, tpu.core_type = #tpu.core_type<tc>, window_params = [{transform_indices = @transform_0, window_bounds = array<i64: 8, 128>}, {pipeline_mode = #tpu.pipeline_mode<synchronous>, transform_indices = @transform_1, window_bounds = array<i64: 1, 128>}, {pipeline_mode = #tpu.pipeline_mode<synchronous>, transform_indices = @transform_2, window_bounds = array<i64: 1, 128>}, {pipeline_mode = #tpu.pipeline_mode<synchronous>, transform_indices = @transform_3, window_bounds = array<i64: 128, 128>}, {pipeline_mode = #tpu.pipeline_mode<synchronous>, transform_indices = @transform_4, window_bounds = array<i64: 1, 128>}, {transform_indices = @transform_5, window_bounds = array<i64: 8, 128>}]} {
    %c0_i32 = arith.constant 0 : i32
    %0 = arith.cmpi eq, %arg1, %c0_i32 : i32
    %1 = arith.extui %0 : i1 to i32
    %c0_i32_0 = arith.constant 0 : i32
    %2 = arith.cmpi ne, %1, %c0_i32_0 : i32
    scf.if %2 {
      %c0_9 = arith.constant 0 : index
      %c0_10 = arith.constant 0 : index
      %15 = vector.load %arg2[%c0_9, %c0_10] : memref<8x128xf32, #tpu.memory_space<vmem>>, vector<8x128xf32>
      %cst_11 = arith.constant dense<0.000000e+00> : vector<8xf32>
      %16 = vector.multi_reduction <add>, %15, %cst_11 [1] : vector<8x128xf32> to vector<8xf32>
      %17 = vector.shape_cast %16 : vector<8xf32> to vector<8x1xf32>
      %cst_12 = arith.constant 7.812500e-03 : f32
      %18 = vector.broadcast %cst_12 : f32 to vector<8x1xf32>
      %19 = arith.mulf %17, %18 : vector<8x1xf32>
      %20 = arith.mulf %15, %15 : vector<8x128xf32>
      %cst_13 = arith.constant dense<0.000000e+00> : vector<8xf32>
      %21 = vector.multi_reduction <add>, %20, %cst_13 [1] : vector<8x128xf32> to vector<8xf32>
      %22 = vector.shape_cast %21 : vector<8xf32> to vector<8x1xf32>
      %cst_14 = arith.constant 7.812500e-03 : f32
      %23 = vector.broadcast %cst_14 : f32 to vector<8x1xf32>
      %24 = arith.mulf %22, %23 : vector<8x1xf32>
      %25 = arith.mulf %19, %19 : vector<8x1xf32>
      %26 = arith.subf %24, %25 : vector<8x1xf32>
      %27 = vector.broadcast %19 : vector<8x1xf32> to vector<8x128xf32>
      %28 = arith.subf %15, %27 : vector<8x128xf32>
      %cst_15 = arith.constant 9.99999974E-6 : f32
      %29 = vector.broadcast %cst_15 : f32 to vector<8x1xf32>
      %30 = arith.addf %26, %29 : vector<8x1xf32>
      %31 = math.rsqrt %30 : vector<8x1xf32>
      %32 = vector.broadcast %31 : vector<8x1xf32> to vector<8x128xf32>
      %33 = arith.mulf %28, %32 : vector<8x128xf32>
      %c0_16 = arith.constant 0 : index
      %c0_17 = arith.constant 0 : index
      %34 = vector.load %arg3[%c0_16, %c0_17] : memref<1x128xf32, #tpu.memory_space<vmem>>, vector<1x128xf32>
      %35 = vector.broadcast %34 : vector<1x128xf32> to vector<8x128xf32>
      %36 = arith.mulf %33, %35 : vector<8x128xf32>
      %c0_18 = arith.constant 0 : index
      %c0_19 = arith.constant 0 : index
      %37 = vector.load %arg4[%c0_18, %c0_19] : memref<1x128xf32, #tpu.memory_space<vmem>>, vector<1x128xf32>
      %38 = vector.broadcast %37 : vector<1x128xf32> to vector<8x128xf32>
      %39 = arith.addf %36, %38 : vector<8x128xf32>
      %40 = arith.mulf %39, %39 : vector<8x128xf32>
      %41 = arith.mulf %39, %40 : vector<8x128xf32>
      %cst_20 = arith.constant 4.471500e-02 : f32
      %42 = vector.broadcast %cst_20 : f32 to vector<8x128xf32>
      %43 = arith.mulf %42, %41 : vector<8x128xf32>
      %44 = arith.addf %39, %43 : vector<8x128xf32>
      %cst_21 = arith.constant 0.797884583 : f32
      %45 = vector.broadcast %cst_21 : f32 to vector<8x128xf32>
      %46 = arith.mulf %45, %44 : vector<8x128xf32>
      %47 = math.tanh %46 : vector<8x128xf32>
      %cst_22 = arith.constant 1.000000e+00 : f32
      %48 = vector.broadcast %cst_22 : f32 to vector<8x128xf32>
      %49 = arith.addf %48, %47 : vector<8x128xf32>
      %cst_23 = arith.constant 5.000000e-01 : f32
      %50 = vector.broadcast %cst_23 : f32 to vector<8x128xf32>
      %51 = arith.mulf %50, %49 : vector<8x128xf32>
      %52 = arith.mulf %39, %51 : vector<8x128xf32>
      %53 = arith.truncf %52 : vector<8x128xf32> to vector<8x128xbf16>
      %c0_24 = arith.constant 0 : index
      %c0_25 = arith.constant 0 : index
      %54 = vector.load %arg8[%c0_24, %c0_25] : memref<8x128xbf16, #tpu.memory_space<vmem>>, vector<8x128xbf16>
      tpu.vector_store %arg8[%c0_24, %c0_25], %53 {strides = array<i32>} : memref<8x128xbf16, #tpu.memory_space<vmem>>, vector<8x128xbf16>,
    } else {
    }
    %c0 = arith.constant 0 : index
    %c0_1 = arith.constant 0 : index
    %3 = vector.load %arg8[%c0, %c0_1] : memref<8x128xbf16, #tpu.memory_space<vmem>>, vector<8x128xbf16>
    %c0_2 = arith.constant 0 : index
    %c0_3 = arith.constant 0 : index
    %4 = vector.load %arg5[%c0_2, %c0_3] : memref<128x128xbf16, #tpu.memory_space<vmem>>, vector<128x128xbf16>
    %cst = arith.constant dense<0.000000e+00> : vector<8x128xf32>
    %5 = tpu.matmul %3, %4, %cst {dimension_numbers = #tpu.dot_dimension_numbers<[1], [0], [0], [1], [0, 0, 1, 1], [], []>} : vector<8x128xbf16>, vector<128x128xbf16>, vector<8x128xf32> -> vector<8x128xf32>
    %c0_4 = arith.constant 0 : index
    %c0_5 = arith.constant 0 : index
    %6 = vector.load %arg6[%c0_4, %c0_5] : memref<1x128xf32, #tpu.memory_space<vmem>>, vector<1x128xf32>
    %7 = vector.broadcast %6 : vector<1x128xf32> to vector<8x128xf32>
    %8 = arith.addf %5, %7 : vector<8x128xf32>
    %c128_i32 = arith.constant 128 : i32
    %9 = arith.muli %arg1, %c128_i32 : i32
    %10 = tpu.assume_multiple %9, 128 : i32
    %c0_6 = arith.constant 0 : index
    %11 = arith.index_cast %10 : i32 to index
    %12 = vector.load %arg2[%c0_6, %11] : memref<8x128xf32, #tpu.memory_space<vmem>>, vector<8x128xf32>
    %13 = arith.addf %8, %12 : vector<8x128xf32>
    %c0_7 = arith.constant 0 : index
    %c0_8 = arith.constant 0 : index
    %14 = vector.load %arg7[%c0_7, %c0_8] : memref<8x128xf32, #tpu.memory_space<vmem>>, vector<8x128xf32>
    tpu.vector_store %arg7[%c0_7, %c0_8], %13 {strides = array<i32>} : memref<8x128xf32, #tpu.memory_space<vmem>>, vector<8x128xf32>,
    return
  }
  func.func @transform_0(%arg0: i32, %arg1: i32) -> (i32, i32) {
    %c0_i32 = arith.constant 0 : i32
    %c0_i32_0 = arith.constant 0 : i32
    return %arg0, %c0_i32 : i32, i32
  }
  func.func @transform_1(%arg0: i32, %arg1: i32) -> (i32, i32) {
    %c0_i32 = arith.constant 0 : i32
    %c0_i32_0 = arith.constant 0 : i32
    %c0_i32_1 = arith.constant 0 : i32
    return %c0_i32, %c0_i32_0 : i32, i32
  }
  func.func @transform_2(%arg0: i32, %arg1: i32) -> (i32, i32) {
    %c0_i32 = arith.constant 0 : i32
    %c0_i32_0 = arith.constant 0 : i32
    %c0_i32_1 = arith.constant 0 : i32
    return %c0_i32, %c0_i32_0 : i32, i32
  }
  func.func @transform_3(%arg0: i32, %arg1: i32) -> (i32, i32) {
    %c0_i32 = arith.constant 0 : i32
    %c0_i32_0 = arith.constant 0 : i32
    return %c0_i32, %arg1 : i32, i32
  }
  func.func @transform_4(%arg0: i32, %arg1: i32) -> (i32, i32) {
    %c0_i32 = arith.constant 0 : i32
    %c0_i32_0 = arith.constant 0 : i32
    return %c0_i32, %arg1 : i32, i32
  }
  func.func @transform_5(%arg0: i32, %arg1: i32) -> (i32, i32) {
    %c0_i32 = arith.constant 0 : i32
    return %arg0, %arg1 : i32, i32
  }
}

module attributes {stable_mosaic.version = 11 : i64} {
  func.func @kernel(%arg0: i32, %arg1: i32, %arg2: memref<8x128xf32, #tpu.memory_space<vmem>>, %arg3: memref<1x128xf32, #tpu.memory_space<vmem>>, %arg4: memref<1x128xf32, #tpu.memory_space<vmem>>, %arg5: memref<128x128xbf16, #tpu.memory_space<vmem>>, %arg6: memref<1x128xf32, #tpu.memory_space<vmem>>, %arg7: memref<8x128xf32, #tpu.memory_space<vmem>>, %arg8: memref<8x128xbf16, #tpu.memory_space<vmem>>) attributes {dimension_semantics = [#tpu.dimension_semantics<parallel>, #tpu.dimension_semantics<arbitrary>], iteration_bounds = array<i64: 2, 1>, scalar_prefetch = 0 : i64, scratch_operands = 1 : i64, tpu.core_type = #tpu.core_type<tc>, window_params = [{transform_indices = @transform_0, window_bounds = array<i64: 8, 128>}, {pipeline_mode = #tpu.pipeline_mode<synchronous>, transform_indices = @transform_1, window_bounds = array<i64: 1, 128>}, {pipeline_mode = #tpu.pipeline_mode<synchronous>, transform_indices = @transform_2, window_bounds = array<i64: 1, 128>}, {transform_indices = @transform_3, window_bounds = array<i64: 128, 128>}, {transform_indices = @transform_4, window_bounds = array<i64: 1, 128>}, {transform_indices = @transform_5, window_bounds = array<i64: 8, 128>}]} {
    %c0_i32 = arith.constant 0 : i32
    %0 = arith.cmpi eq, %arg1, %c0_i32 : i32
    %1 = arith.extui %0 : i1 to i32
    %c0_i32_0 = arith.constant 0 : i32
    %2 = arith.cmpi ne, %1, %c0_i32_0 : i32
    scf.if %2 {
      %c0_9 = arith.constant 0 : index
      %c0_10 = arith.constant 0 : index
      %15 = vector.load %arg2[%c0_9, %c0_10] : memref<8x128xf32, #tpu.memory_space<vmem>>, vector<8x128xf32>
      %cst_11 = arith.constant dense<0.000000e+00> : vector<8xf32>
      %16 = vector.multi_reduction <add>, %15, %cst_11 [1] : vector<8x128xf32> to vector<8xf32>
      %17 = vector.shape_cast %16 : vector<8xf32> to vector<8x1xf32>
      %cst_12 = arith.constant 7.812500e-03 : f32
      %18 = vector.broadcast %cst_12 : f32 to vector<8x1xf32>
      %19 = arith.mulf %17, %18 : vector<8x1xf32>
      %20 = arith.mulf %15, %15 : vector<8x128xf32>
      %cst_13 = arith.constant dense<0.000000e+00> : vector<8xf32>
      %21 = vector.multi_reduction <add>, %20, %cst_13 [1] : vector<8x128xf32> to vector<8xf32>
      %22 = vector.shape_cast %21 : vector<8xf32> to vector<8x1xf32>
      %cst_14 = arith.constant 7.812500e-03 : f32
      %23 = vector.broadcast %cst_14 : f32 to vector<8x1xf32>
      %24 = arith.mulf %22, %23 : vector<8x1xf32>
      %25 = arith.mulf %19, %19 : vector<8x1xf32>
      %26 = arith.subf %24, %25 : vector<8x1xf32>
      %27 = vector.broadcast %19 : vector<8x1xf32> to vector<8x128xf32>
      %28 = arith.subf %15, %27 : vector<8x128xf32>
      %cst_15 = arith.constant 9.99999974E-6 : f32
      %29 = vector.broadcast %cst_15 : f32 to vector<8x1xf32>
      %30 = arith.addf %26, %29 : vector<8x1xf32>
      %31 = math.rsqrt %30 : vector<8x1xf32>
      %32 = vector.broadcast %31 : vector<8x1xf32> to vector<8x128xf32>
      %33 = arith.mulf %28, %32 : vector<8x128xf32>
      %c0_16 = arith.constant 0 : index
      %c0_17 = arith.constant 0 : index
      %34 = vector.load %arg3[%c0_16, %c0_17] : memref<1x128xf32, #tpu.memory_space<vmem>>, vector<1x128xf32>
      %35 = vector.broadcast %34 : vector<1x128xf32> to vector<8x128xf32>
      %36 = arith.mulf %33, %35 : vector<8x128xf32>
      %c0_18 = arith.constant 0 : index
      %c0_19 = arith.constant 0 : index
      %37 = vector.load %arg4[%c0_18, %c0_19] : memref<1x128xf32, #tpu.memory_space<vmem>>, vector<1x128xf32>
      %38 = vector.broadcast %37 : vector<1x128xf32> to vector<8x128xf32>
      %39 = arith.addf %36, %38 : vector<8x128xf32>
      %40 = arith.mulf %39, %39 : vector<8x128xf32>
      %41 = arith.mulf %39, %40 : vector<8x128xf32>
      %cst_20 = arith.constant 4.471500e-02 : f32
      %42 = vector.broadcast %cst_20 : f32 to vector<8x128xf32>
      %43 = arith.mulf %42, %41 : vector<8x128xf32>
      %44 = arith.addf %39, %43 : vector<8x128xf32>
      %cst_21 = arith.constant 0.797884583 : f32
      %45 = vector.broadcast %cst_21 : f32 to vector<8x128xf32>
      %46 = arith.mulf %45, %44 : vector<8x128xf32>
      %47 = math.tanh %46 : vector<8x128xf32>
      %cst_22 = arith.constant 1.000000e+00 : f32
      %48 = vector.broadcast %cst_22 : f32 to vector<8x128xf32>
      %49 = arith.addf %48, %47 : vector<8x128xf32>
      %cst_23 = arith.constant 5.000000e-01 : f32
      %50 = vector.broadcast %cst_23 : f32 to vector<8x128xf32>
      %51 = arith.mulf %50, %49 : vector<8x128xf32>
      %52 = arith.mulf %39, %51 : vector<8x128xf32>
      %53 = arith.truncf %52 : vector<8x128xf32> to vector<8x128xbf16>
      %c0_24 = arith.constant 0 : index
      %c0_25 = arith.constant 0 : index
      %54 = vector.load %arg8[%c0_24, %c0_25] : memref<8x128xbf16, #tpu.memory_space<vmem>>, vector<8x128xbf16>
      tpu.vector_store %arg8[%c0_24, %c0_25], %53 {strides = array<i32>} : memref<8x128xbf16, #tpu.memory_space<vmem>>, vector<8x128xbf16>,
    } else {
    }
    %c0 = arith.constant 0 : index
    %c0_1 = arith.constant 0 : index
    %3 = vector.load %arg8[%c0, %c0_1] : memref<8x128xbf16, #tpu.memory_space<vmem>>, vector<8x128xbf16>
    %c0_2 = arith.constant 0 : index
    %c0_3 = arith.constant 0 : index
    %4 = vector.load %arg5[%c0_2, %c0_3] : memref<128x128xbf16, #tpu.memory_space<vmem>>, vector<128x128xbf16>
    %cst = arith.constant dense<0.000000e+00> : vector<8x128xf32>
    %5 = tpu.matmul %3, %4, %cst {dimension_numbers = #tpu.dot_dimension_numbers<[1], [0], [0], [1], [0, 0, 1, 1], [], []>} : vector<8x128xbf16>, vector<128x128xbf16>, vector<8x128xf32> -> vector<8x128xf32>
    %c0_4 = arith.constant 0 : index
    %c0_5 = arith.constant 0 : index
    %6 = vector.load %arg6[%c0_4, %c0_5] : memref<1x128xf32, #tpu.memory_space<vmem>>, vector<1x128xf32>
    %7 = vector.broadcast %6 : vector<1x128xf32> to vector<8x128xf32>
    %8 = arith.addf %5, %7 : vector<8x128xf32>
    %c128_i32 = arith.constant 128 : i32
    %9 = arith.muli %arg1, %c128_i32 : i32
    %10 = tpu.assume_multiple %9, 128 : i32
    %c0_6 = arith.constant 0 : index
    %11 = arith.index_cast %10 : i32 to index
    %12 = vector.load %arg2[%c0_6, %11] : memref<8x128xf32, #tpu.memory_space<vmem>>, vector<8x128xf32>
    %13 = arith.addf %8, %12 : vector<8x128xf32>
    %c0_7 = arith.constant 0 : index
    %c0_8 = arith.constant 0 : index
    %14 = vector.load %arg7[%c0_7, %c0_8] : memref<8x128xf32, #tpu.memory_space<vmem>>, vector<8x128xf32>
    tpu.vector_store %arg7[%c0_7, %c0_8], %13 {strides = array<i32>} : memref<8x128xf32, #tpu.memory_space<vmem>>, vector<8x128xf32>,
    return
  }
  func.func @transform_0(%arg0: i32, %arg1: i32) -> (i32, i32) {
    %c0_i32 = arith.constant 0 : i32
    %c0_i32_0 = arith.constant 0 : i32
    return %arg0, %c0_i32 : i32, i32
  }
  func.func @transform_1(%arg0: i32, %arg1: i32) -> (i32, i32) {
    %c0_i32 = arith.constant 0 : i32
    %c0_i32_0 = arith.constant 0 : i32
    %c0_i32_1 = arith.constant 0 : i32
    return %c0_i32, %c0_i32_0 : i32, i32
  }
  func.func @transform_2(%arg0: i32, %arg1: i32) -> (i32, i32) {
    %c0_i32 = arith.constant 0 : i32
    %c0_i32_0 = arith.constant 0 : i32
    %c0_i32_1 = arith.constant 0 : i32
    return %c0_i32, %c0_i32_0 : i32, i32
  }
  func.func @transform_3(%arg0: i32, %arg1: i32) -> (i32, i32) {
    %c0_i32 = arith.constant 0 : i32
    %c0_i32_0 = arith.constant 0 : i32
    return %c0_i32, %arg1 : i32, i32
  }
  func.func @transform_4(%arg0: i32, %arg1: i32) -> (i32, i32) {
    %c0_i32 = arith.constant 0 : i32
    %c0_i32_0 = arith.constant 0 : i32
    return %c0_i32, %arg1 : i32, i32
  }
  func.func @transform_5(%arg0: i32, %arg1: i32) -> (i32, i32) {
    %c0_i32 = arith.constant 0 : i32
    return %arg0, %arg1 : i32, i32
  }
}

</mosaic_0001>

<llo_original>
// kernel: tpu_custom_call.1
$region0: #{tpu_custom_call.1}
  #allocation0 [shape = 'u32[]', space=smem, size = 0x4, offset = 0x4, fixed_abs, tag = 'smem constant byte address 0x4 - core index']
  #allocation1 [shape = 'u32[144,128]{1,0:T(1,128)}', space=vmem, size = 0x12000, scoped, tag = 'internal scratch']
  #allocation2 [shape = 'bf16[8,128]{1,0:T(8,128)(2,1)}', space=vmem, size = 0x800, scoped, tag = 'scratch operand']
  %s0 = inlined_call_operand.hbm [shape: f32[16,128], index: 0, kind: input, shape index: {}]
  %s1 = inlined_call_operand.vmem [shape: f32[1,128], index: 1, kind: input, shape index: {}]
  %s2 = inlined_call_operand.vmem [shape: f32[1,128], index: 2, kind: input, shape index: {}]
  %s3 = inlined_call_operand.hbm [shape: bf16[128,128], index: 3, kind: input, shape index: {}]
  %s4 = inlined_call_operand.vmem [shape: f32[1,128], index: 4, kind: input, shape index: {}]
  %s5 = inlined_call_operand.hbm [shape: f32[16,128], index: 5, kind: output, shape index: {}]
  %s6 = sld [smem:[#allocation0]]
  $region65: #{tpu_custom_call.1} parent=0
    _
  %s8 = ssub.s32 1, %s6
  %s9 = scalar_select 0, %s8, %s6
  $region1: #{tpu_custom_call.1} parent=0
    #allocation3 [shape = 'u8[8192]{0}', space=vmem, size = 0x2000, scoped, tag = 'input window, operand 0']
    #allocation4 [shape = 's32[2]{0}', space=sflag, size = 0x8, scoped, tag = 'scoped memory for tpu_custom_call.1']
    #allocation5 [shape = 's32[2]{0}', space=sflag, size = 0x8, scoped, tag = 'scoped memory for tpu_custom_call.1']
    #allocation6 [shape = 'u8[32768]{0}', space=vmem, size = 0x8000, scoped, tag = 'input window, operand 3, single buffered']
    #allocation7 [shape = 's32[1]{0}', space=sflag, size = 0x4, scoped, tag = 'scoped memory for tpu_custom_call.1']
    #allocation8 [shape = 'u8[8192]{0}', space=vmem, size = 0x2000, scoped, tag = 'output window, operand 0']
    %10 = vsyncpa [#allocation4], 0
    %s11 = scalar_lea.sflag [#allocation4], 1
    %12 = vsyncpa %s11, 0
    %13 = vsyncpa [#allocation7], 0
    %14 = vsyncpa [#allocation5], 0
    %s15 = scalar_lea.sflag [#allocation5], 1
    %16 = vsyncpa %s15, 0
    loop: start=0, step=1, limit=4
    $region2: #{tpu_custom_call.1} parent=1 // loop_pre_header
      _
    $region3: #{tpu_custom_call.1} parent=1 // loop_header
      %s18 = sphi 0, %s22
      %p19 = scmp.ge.s32.totalorder %s18, 4
      %s25 = sphi 0, %s37
      %s26 = sphi 0, %s33
      %s27 = sphi 0, %s25
      %s28 = sphi 0, %s26
      %s29 = sphi 0, %s27
      %s30 = sphi 0, %s28
      %s40 = sphi 0, %s42
      %s43 = sphi 0, %s40
      %s44 = sphi 0, %s43
      %s60 = sphi 0, %s44
      %s64 = sphi 0, %s64
      %s66 = sphi 0, %s64
      %s67 = sphi 0, %s66
      %s81 = sphi 0, %s67
      %s85 = sphi 0, %s85
      %s87 = sphi 0, %s85
      %s88 = sphi 0, %s87
      %s102 = sphi 0, %s88
      %s108 = sphi 0, %s110
      %s111 = sphi 0, %s108
      %s112 = sphi 0, %s111
      %s128 = sphi 0, %s112
      %s134 = sphi 0, %s136
      %s137 = sphi 0, %s134
      %s138 = sphi 0, %s137
      %s154 = sphi 0, %s138
      %s162 = sphi 0, %s164
      %s165 = sphi 0, %s162
      %s166 = sphi 0, %s165
      %s182 = sphi 0, %s166
    $region4: #{tpu_custom_call.1} parent=1 // loop_header_branch
      %21 = sbr.rel (%p19) target = $region8
    $region5: #{tpu_custom_call.1} parent=1 // loop_body
      %s23 = ssub.s32 %s18, 1
      %s24 = ssub.s32 %s18, 2
      %s31 = sadd.s32 1, %s26
      %p32 = scmp.ge.s32.totalorder %s31, 1
      %s33 = scalar_select %p32, 0, %s31
      %s34 = sadd.s32 1, %s25
      %s35 = scalar_select %p32, %s34, %s25
      %p36 = scmp.ge.s32.totalorder %s35, 2
      %s37 = scalar_select %p36, 0, %s35
      %s38 = ssub.s32 %s25, %s37
      %p39 = scmp.eq.s32.totalorder %s38, 0
      %s41 = sadd.s32 %s40, 1
      %s42 = scalar_select %p39, %s40, %s41
      %p45 = pneg %p39
      %p46 = scmp.eq.s32.totalorder %s18, 1
      %p47 = por %p45, %p46
      %p48 = scmp.ne.s32.totalorder %s40, %s43
      %p49 = scmp.eq.s32.totalorder %s18, 0
      %p50 = por %p48, %p49
      %p51 = scmp.ne.s32.totalorder %s40, %s43
      %p52 = scmp.eq.s32.totalorder %s23, 1
      %p53 = por %p51, %p52
      %p54 = scmp.ne.s32.totalorder %s43, %s44
      %p55 = scmp.eq.s32.totalorder %s23, 0
      %p56 = por %p54, %p55
      %p57 = scmp.ne.s32.totalorder %s43, %s44
      %p58 = scmp.eq.s32.totalorder %s24, 1
      %p59 = por %p57, %p58
      %p61 = scmp.ne.s32.totalorder %s44, %s60
      %p62 = scmp.eq.s32.totalorder %s24, 0
      %p63 = por %p61, %p62
      %s65 = sadd.s32 %s64, 1
      %p68 = scmp.eq.s32.totalorder %s18, 1
      %p69 = scmp.ne.s32.totalorder %s64, %s66
      %p70 = scmp.eq.s32.totalorder %s18, 0
      %p71 = por %p69, %p70
      %p72 = scmp.ne.s32.totalorder %s64, %s66
      %p73 = scmp.eq.s32.totalorder %s23, 1
      %p74 = por %p72, %p73
      %p75 = scmp.ne.s32.totalorder %s66, %s67
      %p76 = scmp.eq.s32.totalorder %s23, 0
      %p77 = por %p75, %p76
      %p78 = scmp.ne.s32.totalorder %s66, %s67
      %p79 = scmp.eq.s32.totalorder %s24, 1
      %p80 = por %p78, %p79
      %p82 = scmp.ne.s32.totalorder %s67, %s81
      %p83 = scmp.eq.s32.totalorder %s24, 0
      %p84 = por %p82, %p83
      %s86 = sadd.s32 %s85, 1
      %p89 = scmp.eq.s32.totalorder %s18, 1
      %p90 = scmp.ne.s32.totalorder %s85, %s87
      %p91 = scmp.eq.s32.totalorder %s18, 0
      %p92 = por %p90, %p91
      %p93 = scmp.ne.s32.totalorder %s85, %s87
      %p94 = scmp.eq.s32.totalorder %s23, 1
      %p95 = por %p93, %p94
      %p96 = scmp.ne.s32.totalorder %s87, %s88
      %p97 = scmp.eq.s32.totalorder %s23, 0
      %p98 = por %p96, %p97
      %p99 = scmp.ne.s32.totalorder %s87, %s88
      %p100 = scmp.eq.s32.totalorder %s24, 1
      %p101 = por %p99, %p100
      %p103 = scmp.ne.s32.totalorder %s88, %s102
      %p104 = scmp.eq.s32.totalorder %s24, 0
      %p105 = por %p103, %p104
      %s106 = ssub.s32 %s26, %s33
      %p107 = scmp.eq.s32.totalorder %s106, 0
      %s109 = sadd.s32 %s108, 1
      %s110 = scalar_select %p107, %s108, %s109
      %p113 = pneg %p107
      %p114 = scmp.eq.s32.totalorder %s18, 1
      %p115 = por %p113, %p114
      %p116 = scmp.ne.s32.totalorder %s108, %s111
      %p117 = scmp.eq.s32.totalorder %s18, 0
      %p118 = por %p116, %p117
      %p119 = scmp.ne.s32.totalorder %s108, %s111
      %p120 = scmp.eq.s32.totalorder %s23, 1
      %p121 = por %p119, %p120
      %p122 = scmp.ne.s32.totalorder %s111, %s112
      %p123 = scmp.eq.s32.totalorder %s23, 0
      %p124 = por %p122, %p123
      %p125 = scmp.ne.s32.totalorder %s111, %s112
      %p126 = scmp.eq.s32.totalorder %s24, 1
      %p127 = por %p125, %p126
      %p129 = scmp.ne.s32.totalorder %s112, %s128
      %p130 = scmp.eq.s32.totalorder %s24, 0
      %p131 = por %p129, %p130
      %s132 = ssub.s32 %s26, %s33
      %p133 = scmp.eq.s32.totalorder %s132, 0
      %s135 = sadd.s32 %s134, 1
      %s136 = scalar_select %p133, %s134, %s135
      %p139 = pneg %p133
      %p140 = scmp.eq.s32.totalorder %s18, 1
      %p141 = por %p139, %p140
      %p142 = scmp.ne.s32.totalorder %s134, %s137
      %p143 = scmp.eq.s32.totalorder %s18, 0
      %p144 = por %p142, %p143
      %p145 = scmp.ne.s32.totalorder %s134, %s137
      %p146 = scmp.eq.s32.totalorder %s23, 1
      %p147 = por %p145, %p146
      %p148 = scmp.ne.s32.totalorder %s137, %s138
      %p149 = scmp.eq.s32.totalorder %s23, 0
      %p150 = por %p148, %p149
      %p151 = scmp.ne.s32.totalorder %s137, %s138
      %p152 = scmp.eq.s32.totalorder %s24, 1
      %p153 = por %p151, %p152
      %p155 = scmp.ne.s32.totalorder %s138, %s154
      %p156 = scmp.eq.s32.totalorder %s24, 0
      %p157 = por %p155, %p156
      %s158 = ssub.s32 %s25, %s37
      %s159 = ssub.s32 %s26, %s33
      %s160 = sor.u32 %s158, %s159
      %p161 = scmp.eq.s32.totalorder %s160, 0
      %s163 = sadd.s32 %s162, 1
      %s164 = scalar_select %p161, %s162, %s163
      %p167 = pneg %p161
      %p168 = scmp.eq.s32.totalorder %s18, 1
      %p169 = por %p167, %p168
      %p170 = scmp.ne.s32.totalorder %s162, %s165
      %p171 = scmp.eq.s32.totalorder %s18, 0
      %p172 = por %p170, %p171
      %p173 = scmp.ne.s32.totalorder %s162, %s165
      %p174 = scmp.eq.s32.totalorder %s23, 1
      %p175 = por %p173, %p174
      %p176 = scmp.ne.s32.totalorder %s165, %s166
      %p177 = scmp.eq.s32.totalorder %s23, 0
      %p178 = por %p176, %p177
      %p179 = scmp.ne.s32.totalorder %s165, %s166
      %p180 = scmp.eq.s32.totalorder %s24, 1
      %p181 = por %p179, %p180
      %p183 = scmp.ne.s32.totalorder %s166, %s182
      %p184 = scmp.eq.s32.totalorder %s24, 0
      %p185 = por %p183, %p184
      %p186 = scmp.le.s32.totalorder 1, %s18
      %p187 = scmp.lt.s32.totalorder %s18, 3
      %p188 = pnand %p186, %p187
      %p189 = pneg %p188
      // Predicated region
      $region9: #{tpu_custom_call.1} parent=5 // pred_check
        _
      $region10: #{tpu_custom_call.1} parent=5 // pred_check_branch
        %191 = sbr.rel (%p188) target = $region12
      $region11: #{tpu_custom_call.1} parent=5 // pred_region
        %s192 = ssub.s32 %s18, 1
        // Predicated region
        $region13: #{tpu_custom_call.1} parent=11 // pred_check
          %p193 = pneg %p77
        $region14: #{tpu_custom_call.1} parent=11 // pred_check_branch
          %195 = sbr.rel (%p193) target = $region16
        $region15: #{tpu_custom_call.1} parent=11 // pred_region
          _
        $region16: #{tpu_custom_call.1} parent=11 // pred_fallthru
          _
        // Predicated region
        $region17: #{tpu_custom_call.1} parent=11 // pred_check
          %p196 = pneg %p98
        $region18: #{tpu_custom_call.1} parent=11 // pred_check_branch
          %198 = sbr.rel (%p196) target = $region20
        $region19: #{tpu_custom_call.1} parent=11 // pred_region
          _
        $region20: #{tpu_custom_call.1} parent=11 // pred_fallthru
          _
        // Predicated region
        $region21: #{tpu_custom_call.1} parent=11 // pred_check
          %p199 = pneg %p124
        $region22: #{tpu_custom_call.1} parent=11 // pred_check_branch
          %201 = sbr.rel (%p199) target = $region24
        $region23: #{tpu_custom_call.1} parent=11 // pred_region
          %s203 = ssub.s32 1024, 1024
          %204 = vsyncadd [#allocation7], %s203
          %s205 = smul.addr %s28, 64
          %s206 = scalar_lea.hbm %s3, %s205
          %s207 = sshll.u32 [#allocation6], 4
          %s208 = int_to_ptr.vmem [resolvable:$true] %s207
          %213 = dma.hbm_to_vmem [thread:$0]  %s206, 1024, %s208, [#allocation7], 64, 64, 4
        $region24: #{tpu_custom_call.1} parent=11 // pred_fallthru
          _
        // Predicated region
        $region25: #{tpu_custom_call.1} parent=11 // pred_check
          %p214 = pneg %p150
        $region26: #{tpu_custom_call.1} parent=11 // pred_check_branch
          %216 = sbr.rel (%p214) target = $region28
        $region27: #{tpu_custom_call.1} parent=11 // pred_region
          %p217 = scmp.lt.s32.totalorder %s28, 0
          %s218 = scalar_select %p217, %s28, 0
          %s219 = scalar_lea.vmem %s4, %s218
        $region28: #{tpu_custom_call.1} parent=11 // pred_fallthru
          _
      $region12: #{tpu_custom_call.1} parent=5 // pred_fallthru
        _
      %p220 = scmp.lt.s32.totalorder %s18, 2
      // Predicated region
      $region29: #{tpu_custom_call.1} parent=5 // pred_check
        %p221 = pneg %p220
      $region30: #{tpu_custom_call.1} parent=5 // pred_check_branch
        %223 = sbr.rel (%p221) target = $region32
      $region31: #{tpu_custom_call.1} parent=5 // pred_region
        // Predicated region
        $region33: #{tpu_custom_call.1} parent=31 // pred_check
          %p224 = pneg %p50
        $region34: #{tpu_custom_call.1} parent=31 // pred_check_branch
          %226 = sbr.rel (%p224) target = $region36
        $region35: #{tpu_custom_call.1} parent=31 // pred_region
          %s227 = sand.u32 %s40, 1
          %s228 = scalar_lea.sflag [#allocation4], %s227
          %s229 = sand.u32 %s40, 1
          %s230 = smul.addr %s229, 8
          %s231 = scalar_lea.vmem [#allocation3], %s230
          %s233 = ssub.s32 128, 128
          %234 = vsyncadd %s228, %s233
          %s235 = smul.addr %s25, 128
          %s236 = scalar_lea.hbm %s0, %s235
          %s238 = sshll.u32 %s231, 4
          %s239 = int_to_ptr.vmem [resolvable:$true] %s238
          %241 = dma.hbm_to_vmem [thread:$0]  %s236, 128, %s239, %s228
        $region36: #{tpu_custom_call.1} parent=31 // pred_fallthru
          _
      $region32: #{tpu_custom_call.1} parent=5 // pred_fallthru
        _
      %p242 = scmp.le.s32.totalorder 1, %s18
      %p243 = scmp.lt.s32.totalorder %s18, 3
      %p244 = pnand %p242, %p243
      %p245 = pneg %p244
      // Predicated region
      $region37: #{tpu_custom_call.1} parent=5 // pred_check
        _
      $region38: #{tpu_custom_call.1} parent=5 // pred_check_branch
        %247 = sbr.rel (%p244) target = $region40
      $region39: #{tpu_custom_call.1} parent=5 // pred_region
        %s248 = ssub.s32 %s18, 1
        %s249 = sand.u32 %s43, 1
        %s250 = scalar_lea.sflag [#allocation4], %s249
        %s251 = sand.u32 %s43, 1
        %s252 = smul.addr %s251, 8
        %s253 = scalar_lea.vmem [#allocation3], %s252
        // Predicated region
        $region41: #{tpu_custom_call.1} parent=39 // pred_check
          %p254 = pneg %p56
        $region42: #{tpu_custom_call.1} parent=39 // pred_check_branch
          %256 = sbr.rel (%p254) target = $region44
        $region43: #{tpu_custom_call.1} parent=39 // pred_region
          %257 = dma.done %s250, 128
        $region44: #{tpu_custom_call.1} parent=39 // pred_fallthru
          _
        // Predicated region
        $region45: #{tpu_custom_call.1} parent=39 // pred_check
          %p258 = pneg %p124
        $region46: #{tpu_custom_call.1} parent=39 // pred_check_branch
          %260 = sbr.rel (%p258) target = $region48
        $region47: #{tpu_custom_call.1} parent=39 // pred_region
          %261 = dma.done [#allocation7], 1024
        $region48: #{tpu_custom_call.1} parent=39 // pred_fallthru
          _
        %s262 = sand.u32 %s43, 1
        %s263 = scalar_lea.sflag [#allocation4], %s262
        %s264 = sand.u32 %s43, 1
        %s265 = smul.addr %s264, 8
        %s266 = scalar_lea.vmem [#allocation3], %s265
        %p267 = pneg %p56
        %p268 = pneg %p53
        %p269 = pneg %p77
        %p270 = pneg %p74
        %p271 = pneg %p98
        %p272 = pneg %p95
        %p273 = pneg %p124
        %p274 = pneg %p121
        %p275 = scmp.lt.s32.totalorder %s28, 0
        %s276 = scalar_select %p275, %s28, 0
        %s277 = scalar_lea.vmem %s4, %s276
        %p278 = pneg %p150
        %p279 = pneg %p147
        %p280 = pneg %p178
        %p281 = pneg %p175
        %s282 = sand.u32 %s165, 1
        %s283 = scalar_lea.sflag [#allocation5], %s282
        %s284 = sand.u32 %s165, 1
        %s285 = smul.addr %s284, 8
        %s286 = scalar_lea.vmem [#allocation8], %s285
        %p287 = scmp.lt.s32.totalorder %s28, 0
        %s288 = scalar_select %p287, %s28, 0
        %s289 = scalar_lea.vmem %s4, %s288
        %p291 = scmp.eq.s32.totalorder %s28, 0
        // Predicated region
        $region49: #{tpu_custom_call.1} parent=39 // pred_check
          %p292 = pneg %p291
        $region50: #{tpu_custom_call.1} parent=39 // pred_check_branch
          %294 = sbr.rel (%p292) target = $region52
        $region51: #{tpu_custom_call.1} parent=39 // pred_region
          %v295 = vld [vmem:[%s253] sm:$0xff]
          %296 = vadd.xlane.f32.xlu0 %v295
          %v297 = vpop.xlane.xlu0 %296
          %v298 = vmul.f32 %v297, 0.0078125
          %v299 = vmul.f32 %v295, %v295
          %300 = vadd.xlane.f32.xlu0 %v299
          %v301 = vpop.xlane.xlu0 %300
          %v302 = vmul.f32 %v301, 0.0078125
          %v303 = vmul.f32 %v298, %v298
          %v304 = vsub.f32 %v302, %v303
          %v305 = vsub.f32 %v295, %v298
          %v306 = vadd.f32 %v304, 1e-05
          %v307 = vrsqrt.pop %v306
          %v308 = vmul.f32 %v305, %v307
          %v309 = vld [vmem:[%s1] sm:$0x1]
          %v311 = vlaneseq
          %v312 = vshrl.u32 %v311, 7
          %v313 = vsub.s32 0, %v312
          %v314 = vrot.slane %v309, %v313
          %v316 = vmul.f32 %v308, %v314
          %v317 = vld [vmem:[%s2] sm:$0x1]
          %v319 = vlaneseq
          %v320 = vshrl.u32 %v319, 7
          %v321 = vsub.s32 0, %v320
          %v322 = vrot.slane %v317, %v321
          %v324 = vadd.f32 %v316, %v322
          %v325 = vmul.f32 %v324, %v324
          %v326 = vmul.f32 %v324, %v325
          %v327 = vmul.f32 %v326, 0.044715
          %v328 = vadd.f32 %v324, %v327
          %v329 = vmul.f32 %v328, 0.7978846
          %v330 = vtanh.pop %v329
          %v331 = vadd.f32 %v330, 1.0
          %v332 = vmul.f32 %v331, 0.5
          %v333 = vmul.f32 %v324, %v332
          %v334 = vpack.c.bf16 %v333, %v333
          %335 = vst [vmem:[#allocation2] sm:$0xf] %v334
        $region52: #{tpu_custom_call.1} parent=39 // pred_fallthru
          _
        %v336 = vld [vmem:[#allocation2] sm:$0xf]
        %v337 = vld [vmem:[#allocation6] sm:$0xf]
        %v338 = vld [vmem:[#allocation6 + $0x4] sm:$0xf]
        %v339 = vld [vmem:[#allocation6 + $0x8] sm:$0xf]
        %v340 = vld [vmem:[#allocation6 + $0xc] sm:$0xf]
        %v341 = vld [vmem:[#allocation6 + $0x10] sm:$0xf]
        %v342 = vld [vmem:[#allocation6 + $0x14] sm:$0xf]
        %v343 = vld [vmem:[#allocation6 + $0x18] sm:$0xf]
        %v344 = vld [vmem:[#allocation6 + $0x1c] sm:$0xf]
        %v345 = vld [vmem:[#allocation6 + $0x20] sm:$0xf]
        %v346 = vld [vmem:[#allocation6 + $0x24] sm:$0xf]
        %v347 = vld [vmem:[#allocation6 + $0x28] sm:$0xf]
        %v348 = vld [vmem:[#allocation6 + $0x2c] sm:$0xf]
        %v349 = vld [vmem:[#allocation6 + $0x30] sm:$0xf]
        %v350 = vld [vmem:[#allocation6 + $0x34] sm:$0xf]
        %v351 = vld [vmem:[#allocation6 + $0x38] sm:$0xf]
        %v352 = vld [vmem:[#allocation6 + $0x3c] sm:$0xf]
        %v353 = vld [vmem:[%s289] sm:$0x1]
        %v355 = vlaneseq
        %v356 = vshrl.u32 %v355, 7
        %v357 = vsub.s32 0, %v356
        %v358 = vrot.slane %v353, %v357
        %v376 = vunpack.c.l.b16 %v337
        %v377 = vunpack.c.l.b16 %v338
        %v378 = vunpack.c.l.b16 %v339
        %v379 = vunpack.c.l.b16 %v340
        %v380 = vunpack.c.l.b16 %v341
        %v381 = vunpack.c.l.b16 %v342
        %v382 = vunpack.c.l.b16 %v343
        %v383 = vunpack.c.l.b16 %v344
        %v384 = vunpack.c.l.b16 %v345
        %v385 = vunpack.c.l.b16 %v346
        %v386 = vunpack.c.l.b16 %v347
        %v387 = vunpack.c.l.b16 %v348
        %v388 = vunpack.c.l.b16 %v349
        %v389 = vunpack.c.l.b16 %v350
        %v390 = vunpack.c.l.b16 %v351
        %v391 = vunpack.c.l.b16 %v352
        %v392 = vpack.c.b16 %v377, %v376
        %v393 = vpack.c.b16 %v379, %v378
        %v394 = vpack.c.b16 %v381, %v380
        %v395 = vpack.c.b16 %v383, %v382
        %v396 = vpack.c.b16 %v385, %v384
        %v397 = vpack.c.b16 %v387, %v386
        %v398 = vpack.c.b16 %v389, %v388
        %v399 = vpack.c.b16 %v391, %v390
        %408 = vmatprep.subr.bf16.mxu0 0
        %409 = vmatpush1.bf16.msra.mxu0 %v392
        %410 = vmatprep.subr.bf16.mxu0 0
        %411 = vmatpush1.bf16.msra.mxu0 %v393
        %412 = vmatprep.subr.bf16.mxu0 0
        %413 = vmatpush1.bf16.msra.mxu0 %v394
        %414 = vmatprep.subr.bf16.mxu0 0
        %415 = vmatpush1.bf16.msra.mxu0 %v395
        %416 = vmatprep.subr.bf16.mxu0 0
        %417 = vmatpush1.bf16.msra.mxu0 %v396
        %418 = vmatprep.subr.bf16.mxu0 0
        %419 = vmatpush1.bf16.msra.mxu0 %v397
        %420 = vmatprep.subr.bf16.mxu0 0
        %421 = vmatpush1.bf16.msra.mxu0 %v398
        %422 = vmatprep.subr.bf16.mxu0 0
        %423 = vmatpush1.bf16.msra.mxu0 %v399
        %424 = vmatprep.subr.bf16.mxu0 0
        %425 = vmatpush1.bf16.msra.mxu0 0
        %426 = vmatprep.subr.bf16.mxu0 0
        %427 = vmatpush1.bf16.msra.mxu0 0
        %428 = vmatprep.subr.bf16.mxu0 0
        %429 = vmatpush1.bf16.msra.mxu0 0
        %430 = vmatprep.subr.bf16.mxu0 0
        %431 = vmatpush1.bf16.msra.mxu0 0
        %432 = vmatprep.subr.bf16.mxu0 0
        %433 = vmatpush1.bf16.msra.mxu0 0
        %434 = vmatprep.subr.bf16.mxu0 0
        %435 = vmatpush1.bf16.msra.mxu0 0
        %436 = vmatprep.subr.bf16.mxu0 0
        %437 = vmatpush1.bf16.msra.mxu0 0
        %438 = vmatprep.subr.bf16.mxu0 0
        %439 = vmatpush1.bf16.msra.mxu0 0
        %440 = vmatprep.mubr.bf16.mxu0 0
        %441 = vmatmul.mubr.bf16.gmra.mrb[0].mxu0 %v336
        %v442 = vpop.f32.mrb[0].mxu0
        %v443 = vadd.f32 %v358, %v442
        %v444 = vpop.f32.mrb[0].mxu0
        %v445 = vpop.f32.mrb[0].mxu0
        %v446 = vpop.f32.mrb[0].mxu0
        %447 = vdwg.mxu0
        %s448 = smul.u32 %s28, 128
        %s449 = sshra.s32 %s448, 7
        %s450 = sand.u32 %s448, 127
        %s451 = scalar_lea.vmem %s253, %s449 [#allocation3]
        %v452 = vld [vmem:[%s451] sm:$0xff]
        %v453 = vadd.f32 %v443, %v452
        %454 = vst [vmem:[%s286] sm:$0xff] %v453
        %s455 = sand.u32 %s165, 1
        %s456 = scalar_lea.sflag [#allocation5], %s455
        %s457 = sand.u32 %s165, 1
        %s458 = smul.addr %s457, 8
        %s459 = scalar_lea.vmem [#allocation8], %s458
        // Predicated region
        $region53: #{tpu_custom_call.1} parent=39 // pred_check
          %p460 = pneg %p175
        $region54: #{tpu_custom_call.1} parent=39 // pred_check_branch
          %462 = sbr.rel (%p460) target = $region56
        $region55: #{tpu_custom_call.1} parent=39 // pred_region
          %s464 = ssub.s32 128, 128
          %465 = vsyncadd %s456, %s464
          %s466 = sadd.s32 %s28, %s27
          %s467 = smul.addr %s466, 128
          %s468 = scalar_lea.hbm %s5, %s467
          %s470 = sshll.u32 %s459, 4
          %s471 = int_to_ptr.vmem [resolvable:$true] %s470
          %473 = dma.vmem_to_hbm [thread:$0]  %s471, 128, %s468, %s456
        $region56: #{tpu_custom_call.1} parent=39 // pred_fallthru
          _
      $region40: #{tpu_custom_call.1} parent=5 // pred_fallthru
        _
      %p474 = scmp.le.s32.totalorder 2, %s18
      // Predicated region
      $region57: #{tpu_custom_call.1} parent=5 // pred_check
        %p475 = pneg %p474
      $region58: #{tpu_custom_call.1} parent=5 // pred_check_branch
        %477 = sbr.rel (%p475) target = $region60
      $region59: #{tpu_custom_call.1} parent=5 // pred_region
        %s478 = ssub.s32 %s18, 2
        // Predicated region
        $region61: #{tpu_custom_call.1} parent=59 // pred_check
          %p479 = pneg %p181
        $region62: #{tpu_custom_call.1} parent=59 // pred_check_branch
          %481 = sbr.rel (%p479) target = $region64
        $region63: #{tpu_custom_call.1} parent=59 // pred_region
          %s482 = sand.u32 %s166, 1
          %s483 = scalar_lea.sflag [#allocation5], %s482
          %s484 = sand.u32 %s166, 1
          %s485 = smul.addr %s484, 8
          %s486 = scalar_lea.vmem [#allocation8], %s485
          %487 = dma.done %s483, 128
        $region64: #{tpu_custom_call.1} parent=59 // pred_fallthru
          _
      $region60: #{tpu_custom_call.1} parent=5 // pred_fallthru
        _
    $region6: #{tpu_custom_call.1} parent=1 // loop_footer
      %s22 = sadd.s32 1, %s18
    $region7: #{tpu_custom_call.1} parent=1 // loop_footer_branch
      %17 = sbr.rel target = $region3
    $region8: #{tpu_custom_call.1} parent=1 // loop_exit
      _
    %488 = vsyncpa [#allocation4], 1
    %s489 = scalar_lea.sflag [#allocation4], 1
    %490 = vsyncpa %s489, 1
    %491 = vsyncpa [#allocation7], 1
    %492 = vsyncpa [#allocation5], 1
    %s493 = scalar_lea.sflag [#allocation5], 1
    %494 = vsyncpa %s493, 1

// kernel: tpu_custom_call.1
$region0: #{tpu_custom_call.1}
  #allocation0 [shape = 'u32[]', space=smem, size = 0x4, offset = 0x4, fixed_abs, tag = 'smem constant byte address 0x4 - core index']
  #allocation1 [shape = 'u32[144,128]{1,0:T(1,128)}', space=vmem, size = 0x12000, scoped, tag = 'internal scratch']
  #allocation2 [shape = 'bf16[8,128]{1,0:T(8,128)(2,1)}', space=vmem, size = 0x800, scoped, tag = 'scratch operand']
  %s0 = inlined_call_operand.hbm [shape: f32[16,128], index: 0, kind: input, shape index: {}]
  %s1 = inlined_call_operand.vmem [shape: f32[1,128], index: 1, kind: input, shape index: {}]
  %s2 = inlined_call_operand.vmem [shape: f32[1,128], index: 2, kind: input, shape index: {}]
  %s3 = inlined_call_operand.hbm [shape: bf16[128,128], index: 3, kind: input, shape index: {}]
  %s4 = inlined_call_operand.vmem [shape: f32[1,128], index: 4, kind: input, shape index: {}]
  %s5 = inlined_call_operand.hbm [shape: f32[16,128], index: 5, kind: output, shape index: {}]
  %s6 = sld [smem:[#allocation0]]
  $region65: #{tpu_custom_call.1} parent=0
    _
  %s8 = ssub.s32 1, %s6
  %s9 = scalar_select 0, %s8, %s6
  $region1: #{tpu_custom_call.1} parent=0
    #allocation3 [shape = 'u8[8192]{0}', space=vmem, size = 0x2000, scoped, tag = 'input window, operand 0']
    #allocation4 [shape = 's32[2]{0}', space=sflag, size = 0x8, scoped, tag = 'scoped memory for tpu_custom_call.1']
    #allocation5 [shape = 's32[2]{0}', space=sflag, size = 0x8, scoped, tag = 'scoped memory for tpu_custom_call.1']
    #allocation6 [shape = 'u8[32768]{0}', space=vmem, size = 0x8000, scoped, tag = 'input window, operand 3, single buffered']
    #allocation7 [shape = 's32[1]{0}', space=sflag, size = 0x4, scoped, tag = 'scoped memory for tpu_custom_call.1']
    #allocation8 [shape = 'u8[8192]{0}', space=vmem, size = 0x2000, scoped, tag = 'output window, operand 0']
    %10 = vsyncpa [#allocation4], 0
    %s11 = scalar_lea.sflag [#allocation4], 1
    %12 = vsyncpa %s11, 0
    %13 = vsyncpa [#allocation7], 0
    %14 = vsyncpa [#allocation5], 0
    %s15 = scalar_lea.sflag [#allocation5], 1
    %16 = vsyncpa %s15, 0
    loop: start=0, step=1, limit=4
    $region2: #{tpu_custom_call.1} parent=1 // loop_pre_header
      _
    $region3: #{tpu_custom_call.1} parent=1 // loop_header
      %s18 = sphi 0, %s22
      %p19 = scmp.ge.s32.totalorder %s18, 4
      %s25 = sphi 0, %s37
      %s26 = sphi 0, %s33
      %s27 = sphi 0, %s25
      %s28 = sphi 0, %s26
      %s29 = sphi 0, %s27
      %s30 = sphi 0, %s28
      %s40 = sphi 0, %s42
      %s43 = sphi 0, %s40
      %s44 = sphi 0, %s43
      %s60 = sphi 0, %s44
      %s64 = sphi 0, %s64
      %s66 = sphi 0, %s64
      %s67 = sphi 0, %s66
      %s81 = sphi 0, %s67
      %s85 = sphi 0, %s85
      %s87 = sphi 0, %s85
      %s88 = sphi 0, %s87
      %s102 = sphi 0, %s88
      %s108 = sphi 0, %s110
      %s111 = sphi 0, %s108
      %s112 = sphi 0, %s111
      %s128 = sphi 0, %s112
      %s134 = sphi 0, %s136
      %s137 = sphi 0, %s134
      %s138 = sphi 0, %s137
      %s154 = sphi 0, %s138
      %s162 = sphi 0, %s164
      %s165 = sphi 0, %s162
      %s166 = sphi 0, %s165
      %s182 = sphi 0, %s166
    $region4: #{tpu_custom_call.1} parent=1 // loop_header_branch
      %21 = sbr.rel (%p19) target = $region8
    $region5: #{tpu_custom_call.1} parent=1 // loop_body
      %s23 = ssub.s32 %s18, 1
      %s24 = ssub.s32 %s18, 2
      %s31 = sadd.s32 1, %s26
      %p32 = scmp.ge.s32.totalorder %s31, 1
      %s33 = scalar_select %p32, 0, %s31
      %s34 = sadd.s32 1, %s25
      %s35 = scalar_select %p32, %s34, %s25
      %p36 = scmp.ge.s32.totalorder %s35, 2
      %s37 = scalar_select %p36, 0, %s35
      %s38 = ssub.s32 %s25, %s37
      %p39 = scmp.eq.s32.totalorder %s38, 0
      %s41 = sadd.s32 %s40, 1
      %s42 = scalar_select %p39, %s40, %s41
      %p45 = pneg %p39
      %p46 = scmp.eq.s32.totalorder %s18, 1
      %p47 = por %p45, %p46
      %p48 = scmp.ne.s32.totalorder %s40, %s43
      %p49 = scmp.eq.s32.totalorder %s18, 0
      %p50 = por %p48, %p49
      %p51 = scmp.ne.s32.totalorder %s40, %s43
      %p52 = scmp.eq.s32.totalorder %s23, 1
      %p53 = por %p51, %p52
      %p54 = scmp.ne.s32.totalorder %s43, %s44
      %p55 = scmp.eq.s32.totalorder %s23, 0
      %p56 = por %p54, %p55
      %p57 = scmp.ne.s32.totalorder %s43, %s44
      %p58 = scmp.eq.s32.totalorder %s24, 1
      %p59 = por %p57, %p58
      %p61 = scmp.ne.s32.totalorder %s44, %s60
      %p62 = scmp.eq.s32.totalorder %s24, 0
      %p63 = por %p61, %p62
      %s65 = sadd.s32 %s64, 1
      %p68 = scmp.eq.s32.totalorder %s18, 1
      %p69 = scmp.ne.s32.totalorder %s64, %s66
      %p70 = scmp.eq.s32.totalorder %s18, 0
      %p71 = por %p69, %p70
      %p72 = scmp.ne.s32.totalorder %s64, %s66
      %p73 = scmp.eq.s32.totalorder %s23, 1
      %p74 = por %p72, %p73
      %p75 = scmp.ne.s32.totalorder %s66, %s67
      %p76 = scmp.eq.s32.totalorder %s23, 0
      %p77 = por %p75, %p76
      %p78 = scmp.ne.s32.totalorder %s66, %s67
      %p79 = scmp.eq.s32.totalorder %s24, 1
      %p80 = por %p78, %p79
      %p82 = scmp.ne.s32.totalorder %s67, %s81
      %p83 = scmp.eq.s32.totalorder %s24, 0
      %p84 = por %p82, %p83
      %s86 = sadd.s32 %s85, 1
      %p89 = scmp.eq.s32.totalorder %s18, 1
      %p90 = scmp.ne.s32.totalorder %s85, %s87
      %p91 = scmp.eq.s32.totalorder %s18, 0
      %p92 = por %p90, %p91
      %p93 = scmp.ne.s32.totalorder %s85, %s87
      %p94 = scmp.eq.s32.totalorder %s23, 1
      %p95 = por %p93, %p94
      %p96 = scmp.ne.s32.totalorder %s87, %s88
      %p97 = scmp.eq.s32.totalorder %s23, 0
      %p98 = por %p96, %p97
      %p99 = scmp.ne.s32.totalorder %s87, %s88
      %p100 = scmp.eq.s32.totalorder %s24, 1
      %p101 = por %p99, %p100
      %p103 = scmp.ne.s32.totalorder %s88, %s102
      %p104 = scmp.eq.s32.totalorder %s24, 0
      %p105 = por %p103, %p104
      %s106 = ssub.s32 %s26, %s33
      %p107 = scmp.eq.s32.totalorder %s106, 0
      %s109 = sadd.s32 %s108, 1
      %s110 = scalar_select %p107, %s108, %s109
      %p113 = pneg %p107
      %p114 = scmp.eq.s32.totalorder %s18, 1
      %p115 = por %p113, %p114
      %p116 = scmp.ne.s32.totalorder %s108, %s111
      %p117 = scmp.eq.s32.totalorder %s18, 0
      %p118 = por %p116, %p117
      %p119 = scmp.ne.s32.totalorder %s108, %s111
      %p120 = scmp.eq.s32.totalorder %s23, 1
      %p121 = por %p119, %p120
      %p122 = scmp.ne.s32.totalorder %s111, %s112
      %p123 = scmp.eq.s32.totalorder %s23, 0
      %p124 = por %p122, %p123
      %p125 = scmp.ne.s32.totalorder %s111, %s112
      %p126 = scmp.eq.s32.totalorder %s24, 1
      %p127 = por %p125, %p126
      %p129 = scmp.ne.s32.totalorder %s112, %s128
      %p130 = scmp.eq.s32.totalorder %s24, 0
      %p131 = por %p129, %p130
      %s132 = ssub.s32 %s26, %s33
      %p133 = scmp.eq.s32.totalorder %s132, 0
      %s135 = sadd.s32 %s134, 1
      %s136 = scalar_select %p133, %s134, %s135
      %p139 = pneg %p133
      %p140 = scmp.eq.s32.totalorder %s18, 1
      %p141 = por %p139, %p140
      %p142 = scmp.ne.s32.totalorder %s134, %s137
      %p143 = scmp.eq.s32.totalorder %s18, 0
      %p144 = por %p142, %p143
      %p145 = scmp.ne.s32.totalorder %s134, %s137
      %p146 = scmp.eq.s32.totalorder %s23, 1
      %p147 = por %p145, %p146
      %p148 = scmp.ne.s32.totalorder %s137, %s138
      %p149 = scmp.eq.s32.totalorder %s23, 0
      %p150 = por %p148, %p149
      %p151 = scmp.ne.s32.totalorder %s137, %s138
      %p152 = scmp.eq.s32.totalorder %s24, 1
      %p153 = por %p151, %p152
      %p155 = scmp.ne.s32.totalorder %s138, %s154
      %p156 = scmp.eq.s32.totalorder %s24, 0
      %p157 = por %p155, %p156
      %s158 = ssub.s32 %s25, %s37
      %s159 = ssub.s32 %s26, %s33
      %s160 = sor.u32 %s158, %s159
      %p161 = scmp.eq.s32.totalorder %s160, 0
      %s163 = sadd.s32 %s162, 1
      %s164 = scalar_select %p161, %s162, %s163
      %p167 = pneg %p161
      %p168 = scmp.eq.s32.totalorder %s18, 1
      %p169 = por %p167, %p168
      %p170 = scmp.ne.s32.totalorder %s162, %s165
      %p171 = scmp.eq.s32.totalorder %s18, 0
      %p172 = por %p170, %p171
      %p173 = scmp.ne.s32.totalorder %s162, %s165
      %p174 = scmp.eq.s32.totalorder %s23, 1
      %p175 = por %p173, %p174
      %p176 = scmp.ne.s32.totalorder %s165, %s166
      %p177 = scmp.eq.s32.totalorder %s23, 0
      %p178 = por %p176, %p177
      %p179 = scmp.ne.s32.totalorder %s165, %s166
      %p180 = scmp.eq.s32.totalorder %s24, 1
      %p181 = por %p179, %p180
      %p183 = scmp.ne.s32.totalorder %s166, %s182
      %p184 = scmp.eq.s32.totalorder %s24, 0
      %p185 = por %p183, %p184
      %p186 = scmp.le.s32.totalorder 1, %s18
      %p187 = scmp.lt.s32.totalorder %s18, 3
      %p188 = pnand %p186, %p187
      %p189 = pneg %p188
      // Predicated region
      $region9: #{tpu_custom_call.1} parent=5 // pred_check
        _
      $region10: #{tpu_custom_call.1} parent=5 // pred_check_branch
        %191 = sbr.rel (%p188) target = $region12
      $region11: #{tpu_custom_call.1} parent=5 // pred_region
        %s192 = ssub.s32 %s18, 1
        // Predicated region
        $region13: #{tpu_custom_call.1} parent=11 // pred_check
          %p193 = pneg %p77
        $region14: #{tpu_custom_call.1} parent=11 // pred_check_branch
          %195 = sbr.rel (%p193) target = $region16
        $region15: #{tpu_custom_call.1} parent=11 // pred_region
          _
        $region16: #{tpu_custom_call.1} parent=11 // pred_fallthru
          _
        // Predicated region
        $region17: #{tpu_custom_call.1} parent=11 // pred_check
          %p196 = pneg %p98
        $region18: #{tpu_custom_call.1} parent=11 // pred_check_branch
          %198 = sbr.rel (%p196) target = $region20
        $region19: #{tpu_custom_call.1} parent=11 // pred_region
          _
        $region20: #{tpu_custom_call.1} parent=11 // pred_fallthru
          _
        // Predicated region
        $region21: #{tpu_custom_call.1} parent=11 // pred_check
          %p199 = pneg %p124
        $region22: #{tpu_custom_call.1} parent=11 // pred_check_branch
          %201 = sbr.rel (%p199) target = $region24
        $region23: #{tpu_custom_call.1} parent=11 // pred_region
          %s203 = ssub.s32 1024, 1024
          %204 = vsyncadd [#allocation7], %s203
          %s205 = smul.addr %s28, 64
          %s206 = scalar_lea.hbm %s3, %s205
          %s207 = sshll.u32 [#allocation6], 4
          %s208 = int_to_ptr.vmem [resolvable:$true] %s207
          %213 = dma.hbm_to_vmem [thread:$0]  %s206, 1024, %s208, [#allocation7], 64, 64, 4
        $region24: #{tpu_custom_call.1} parent=11 // pred_fallthru
          _
        // Predicated region
        $region25: #{tpu_custom_call.1} parent=11 // pred_check
          %p214 = pneg %p150
        $region26: #{tpu_custom_call.1} parent=11 // pred_check_branch
          %216 = sbr.rel (%p214) target = $region28
        $region27: #{tpu_custom_call.1} parent=11 // pred_region
          %p217 = scmp.lt.s32.totalorder %s28, 0
          %s218 = scalar_select %p217, %s28, 0
          %s219 = scalar_lea.vmem %s4, %s218
        $region28: #{tpu_custom_call.1} parent=11 // pred_fallthru
          _
      $region12: #{tpu_custom_call.1} parent=5 // pred_fallthru
        _
      %p220 = scmp.lt.s32.totalorder %s18, 2
      // Predicated region
      $region29: #{tpu_custom_call.1} parent=5 // pred_check
        %p221 = pneg %p220
      $region30: #{tpu_custom_call.1} parent=5 // pred_check_branch
        %223 = sbr.rel (%p221) target = $region32
      $region31: #{tpu_custom_call.1} parent=5 // pred_region
        // Predicated region
        $region33: #{tpu_custom_call.1} parent=31 // pred_check
          %p224 = pneg %p50
        $region34: #{tpu_custom_call.1} parent=31 // pred_check_branch
          %226 = sbr.rel (%p224) target = $region36
        $region35: #{tpu_custom_call.1} parent=31 // pred_region
          %s227 = sand.u32 %s40, 1
          %s228 = scalar_lea.sflag [#allocation4], %s227
          %s229 = sand.u32 %s40, 1
          %s230 = smul.addr %s229, 8
          %s231 = scalar_lea.vmem [#allocation3], %s230
          %s233 = ssub.s32 128, 128
          %234 = vsyncadd %s228, %s233
          %s235 = smul.addr %s25, 128
          %s236 = scalar_lea.hbm %s0, %s235
          %s238 = sshll.u32 %s231, 4
          %s239 = int_to_ptr.vmem [resolvable:$true] %s238
          %241 = dma.hbm_to_vmem [thread:$0]  %s236, 128, %s239, %s228
        $region36: #{tpu_custom_call.1} parent=31 // pred_fallthru
          _
      $region32: #{tpu_custom_call.1} parent=5 // pred_fallthru
        _
      %p242 = scmp.le.s32.totalorder 1, %s18
      %p243 = scmp.lt.s32.totalorder %s18, 3
      %p244 = pnand %p242, %p243
      %p245 = pneg %p244
      // Predicated region
      $region37: #{tpu_custom_call.1} parent=5 // pred_check
        _
      $region38: #{tpu_custom_call.1} parent=5 // pred_check_branch
        %247 = sbr.rel (%p244) target = $region40
      $region39: #{tpu_custom_call.1} parent=5 // pred_region
        %s248 = ssub.s32 %s18, 1
        %s249 = sand.u32 %s43, 1
        %s250 = scalar_lea.sflag [#allocation4], %s249
        %s251 = sand.u32 %s43, 1
        %s252 = smul.addr %s251, 8
        %s253 = scalar_lea.vmem [#allocation3], %s252
        // Predicated region
        $region41: #{tpu_custom_call.1} parent=39 // pred_check
          %p254 = pneg %p56
        $region42: #{tpu_custom_call.1} parent=39 // pred_check_branch
          %256 = sbr.rel (%p254) target = $region44
        $region43: #{tpu_custom_call.1} parent=39 // pred_region
          %257 = dma.done %s250, 128
        $region44: #{tpu_custom_call.1} parent=39 // pred_fallthru
          _
        // Predicated region
        $region45: #{tpu_custom_call.1} parent=39 // pred_check
          %p258 = pneg %p124
        $region46: #{tpu_custom_call.1} parent=39 // pred_check_branch
          %260 = sbr.rel (%p258) target = $region48
        $region47: #{tpu_custom_call.1} parent=39 // pred_region
          %261 = dma.done [#allocation7], 1024
        $region48: #{tpu_custom_call.1} parent=39 // pred_fallthru
          _
        %s262 = sand.u32 %s43, 1
        %s263 = scalar_lea.sflag [#allocation4], %s262
        %s264 = sand.u32 %s43, 1
        %s265 = smul.addr %s264, 8
        %s266 = scalar_lea.vmem [#allocation3], %s265
        %p267 = pneg %p56
        %p268 = pneg %p53
        %p269 = pneg %p77
        %p270 = pneg %p74
        %p271 = pneg %p98
        %p272 = pneg %p95
        %p273 = pneg %p124
        %p274 = pneg %p121
        %p275 = scmp.lt.s32.totalorder %s28, 0
        %s276 = scalar_select %p275, %s28, 0
        %s277 = scalar_lea.vmem %s4, %s276
        %p278 = pneg %p150
        %p279 = pneg %p147
        %p280 = pneg %p178
        %p281 = pneg %p175
        %s282 = sand.u32 %s165, 1
        %s283 = scalar_lea.sflag [#allocation5], %s282
        %s284 = sand.u32 %s165, 1
        %s285 = smul.addr %s284, 8
        %s286 = scalar_lea.vmem [#allocation8], %s285
        %p287 = scmp.lt.s32.totalorder %s28, 0
        %s288 = scalar_select %p287, %s28, 0
        %s289 = scalar_lea.vmem %s4, %s288
        %p291 = scmp.eq.s32.totalorder %s28, 0
        // Predicated region
        $region49: #{tpu_custom_call.1} parent=39 // pred_check
          %p292 = pneg %p291
        $region50: #{tpu_custom_call.1} parent=39 // pred_check_branch
          %294 = sbr.rel (%p292) target = $region52
        $region51: #{tpu_custom_call.1} parent=39 // pred_region
          %v295 = vld [vmem:[%s253] sm:$0xff]
          %296 = vadd.xlane.f32.xlu0 %v295
          %v297 = vpop.xlane.xlu0 %296
          %v298 = vmul.f32 %v297, 0.0078125
          %v299 = vmul.f32 %v295, %v295
          %300 = vadd.xlane.f32.xlu0 %v299
          %v301 = vpop.xlane.xlu0 %300
          %v302 = vmul.f32 %v301, 0.0078125
          %v303 = vmul.f32 %v298, %v298
          %v304 = vsub.f32 %v302, %v303
          %v305 = vsub.f32 %v295, %v298
          %v306 = vadd.f32 %v304, 1e-05
          %v307 = vrsqrt.pop %v306
          %v308 = vmul.f32 %v305, %v307
          %v309 = vld [vmem:[%s1] sm:$0x1]
          %v311 = vlaneseq
          %v312 = vshrl.u32 %v311, 7
          %v313 = vsub.s32 0, %v312
          %v314 = vrot.slane %v309, %v313
          %v316 = vmul.f32 %v308, %v314
          %v317 = vld [vmem:[%s2] sm:$0x1]
          %v319 = vlaneseq
          %v320 = vshrl.u32 %v319, 7
          %v321 = vsub.s32 0, %v320
          %v322 = vrot.slane %v317, %v321
          %v324 = vadd.f32 %v316, %v322
          %v325 = vmul.f32 %v324, %v324
          %v326 = vmul.f32 %v324, %v325
          %v327 = vmul.f32 %v326, 0.044715
          %v328 = vadd.f32 %v324, %v327
          %v329 = vmul.f32 %v328, 0.7978846
          %v330 = vtanh.pop %v329
          %v331 = vadd.f32 %v330, 1.0
          %v332 = vmul.f32 %v331, 0.5
          %v333 = vmul.f32 %v324, %v332
          %v334 = vpack.c.bf16 %v333, %v333
          %335 = vst [vmem:[#allocation2] sm:$0xf] %v334
        $region52: #{tpu_custom_call.1} parent=39 // pred_fallthru
          _
        %v336 = vld [vmem:[#allocation2] sm:$0xf]
        %v337 = vld [vmem:[#allocation6] sm:$0xf]
        %v338 = vld [vmem:[#allocation6 + $0x4] sm:$0xf]
        %v339 = vld [vmem:[#allocation6 + $0x8] sm:$0xf]
        %v340 = vld [vmem:[#allocation6 + $0xc] sm:$0xf]
        %v341 = vld [vmem:[#allocation6 + $0x10] sm:$0xf]
        %v342 = vld [vmem:[#allocation6 + $0x14] sm:$0xf]
        %v343 = vld [vmem:[#allocation6 + $0x18] sm:$0xf]
        %v344 = vld [vmem:[#allocation6 + $0x1c] sm:$0xf]
        %v345 = vld [vmem:[#allocation6 + $0x20] sm:$0xf]
        %v346 = vld [vmem:[#allocation6 + $0x24] sm:$0xf]
        %v347 = vld [vmem:[#allocation6 + $0x28] sm:$0xf]
        %v348 = vld [vmem:[#allocation6 + $0x2c] sm:$0xf]
        %v349 = vld [vmem:[#allocation6 + $0x30] sm:$0xf]
        %v350 = vld [vmem:[#allocation6 + $0x34] sm:$0xf]
        %v351 = vld [vmem:[#allocation6 + $0x38] sm:$0xf]
        %v352 = vld [vmem:[#allocation6 + $0x3c] sm:$0xf]
        %v353 = vld [vmem:[%s289] sm:$0x1]
        %v355 = vlaneseq
        %v356 = vshrl.u32 %v355, 7
        %v357 = vsub.s32 0, %v356
        %v358 = vrot.slane %v353, %v357
        %v376 = vunpack.c.l.b16 %v337
        %v377 = vunpack.c.l.b16 %v338
        %v378 = vunpack.c.l.b16 %v339
        %v379 = vunpack.c.l.b16 %v340
        %v380 = vunpack.c.l.b16 %v341
        %v381 = vunpack.c.l.b16 %v342
        %v382 = vunpack.c.l.b16 %v343
        %v383 = vunpack.c.l.b16 %v344
        %v384 = vunpack.c.l.b16 %v345
        %v385 = vunpack.c.l.b16 %v346
        %v386 = vunpack.c.l.b16 %v347
        %v387 = vunpack.c.l.b16 %v348
        %v388 = vunpack.c.l.b16 %v349
        %v389 = vunpack.c.l.b16 %v350
        %v390 = vunpack.c.l.b16 %v351
        %v391 = vunpack.c.l.b16 %v352
        %v392 = vpack.c.b16 %v377, %v376
        %v393 = vpack.c.b16 %v379, %v378
        %v394 = vpack.c.b16 %v381, %v380
        %v395 = vpack.c.b16 %v383, %v382
        %v396 = vpack.c.b16 %v385, %v384
        %v397 = vpack.c.b16 %v387, %v386
        %v398 = vpack.c.b16 %v389, %v388
        %v399 = vpack.c.b16 %v391, %v390
        %408 = vmatprep.subr.bf16.mxu0 0
        %409 = vmatpush1.bf16.msra.mxu0 %v392
        %410 = vmatprep.subr.bf16.mxu0 0
        %411 = vmatpush1.bf16.msra.mxu0 %v393
        %412 = vmatprep.subr.bf16.mxu0 0
        %413 = vmatpush1.bf16.msra.mxu0 %v394
        %414 = vmatprep.subr.bf16.mxu0 0
        %415 = vmatpush1.bf16.msra.mxu0 %v395
        %416 = vmatprep.subr.bf16.mxu0 0
        %417 = vmatpush1.bf16.msra.mxu0 %v396
        %418 = vmatprep.subr.bf16.mxu0 0
        %419 = vmatpush1.bf16.msra.mxu0 %v397
        %420 = vmatprep.subr.bf16.mxu0 0
        %421 = vmatpush1.bf16.msra.mxu0 %v398
        %422 = vmatprep.subr.bf16.mxu0 0
        %423 = vmatpush1.bf16.msra.mxu0 %v399
        %424 = vmatprep.subr.bf16.mxu0 0
        %425 = vmatpush1.bf16.msra.mxu0 0
        %426 = vmatprep.subr.bf16.mxu0 0
        %427 = vmatpush1.bf16.msra.mxu0 0
        %428 = vmatprep.subr.bf16.mxu0 0
        %429 = vmatpush1.bf16.msra.mxu0 0
        %430 = vmatprep.subr.bf16.mxu0 0
        %431 = vmatpush1.bf16.msra.mxu0 0
        %432 = vmatprep.subr.bf16.mxu0 0
        %433 = vmatpush1.bf16.msra.mxu0 0
        %434 = vmatprep.subr.bf16.mxu0 0
        %435 = vmatpush1.bf16.msra.mxu0 0
        %436 = vmatprep.subr.bf16.mxu0 0
        %437 = vmatpush1.bf16.msra.mxu0 0
        %438 = vmatprep.subr.bf16.mxu0 0
        %439 = vmatpush1.bf16.msra.mxu0 0
        %440 = vmatprep.mubr.bf16.mxu0 0
        %441 = vmatmul.mubr.bf16.gmra.mrb[0].mxu0 %v336
        %v442 = vpop.f32.mrb[0].mxu0
        %v443 = vadd.f32 %v358, %v442
        %v444 = vpop.f32.mrb[0].mxu0
        %v445 = vpop.f32.mrb[0].mxu0
        %v446 = vpop.f32.mrb[0].mxu0
        %447 = vdwg.mxu0
        %s448 = smul.u32 %s28, 128
        %s449 = sshra.s32 %s448, 7
        %s450 = sand.u32 %s448, 127
        %s451 = scalar_lea.vmem %s253, %s449 [#allocation3]
        %v452 = vld [vmem:[%s451] sm:$0xff]
        %v453 = vadd.f32 %v443, %v452
        %454 = vst [vmem:[%s286] sm:$0xff] %v453
        %s455 = sand.u32 %s165, 1
        %s456 = scalar_lea.sflag [#allocation5], %s455
        %s457 = sand.u32 %s165, 1
        %s458 = smul.addr %s457, 8
        %s459 = scalar_lea.vmem [#allocation8], %s458
        // Predicated region
        $region53: #{tpu_custom_call.1} parent=39 // pred_check
          %p460 = pneg %p175
        $region54: #{tpu_custom_call.1} parent=39 // pred_check_branch
          %462 = sbr.rel (%p460) target = $region56
        $region55: #{tpu_custom_call.1} parent=39 // pred_region
          %s464 = ssub.s32 128, 128
          %465 = vsyncadd %s456, %s464
          %s466 = sadd.s32 %s28, %s27
          %s467 = smul.addr %s466, 128
          %s468 = scalar_lea.hbm %s5, %s467
          %s470 = sshll.u32 %s459, 4
          %s471 = int_to_ptr.vmem [resolvable:$true] %s470
          %473 = dma.vmem_to_hbm [thread:$0]  %s471, 128, %s468, %s456
        $region56: #{tpu_custom_call.1} parent=39 // pred_fallthru
          _
      $region40: #{tpu_custom_call.1} parent=5 // pred_fallthru
        _
      %p474 = scmp.le.s32.totalorder 2, %s18
      // Predicated region
      $region57: #{tpu_custom_call.1} parent=5 // pred_check
        %p475 = pneg %p474
      $region58: #{tpu_custom_call.1} parent=5 // pred_check_branch
        %477 = sbr.rel (%p475) target = $region60
      $region59: #{tpu_custom_call.1} parent=5 // pred_region
        %s478 = ssub.s32 %s18, 2
        // Predicated region
        $region61: #{tpu_custom_call.1} parent=59 // pred_check
          %p479 = pneg %p181
        $region62: #{tpu_custom_call.1} parent=59 // pred_check_branch
          %481 = sbr.rel (%p479) target = $region64
        $region63: #{tpu_custom_call.1} parent=59 // pred_region
          %s482 = sand.u32 %s166, 1
          %s483 = scalar_lea.sflag [#allocation5], %s482
          %s484 = sand.u32 %s166, 1
          %s485 = smul.addr %s484, 8
          %s486 = scalar_lea.vmem [#allocation8], %s485
          %487 = dma.done %s483, 128
        $region64: #{tpu_custom_call.1} parent=59 // pred_fallthru
          _
      $region60: #{tpu_custom_call.1} parent=5 // pred_fallthru
        _
    $region6: #{tpu_custom_call.1} parent=1 // loop_footer
      %s22 = sadd.s32 1, %s18
    $region7: #{tpu_custom_call.1} parent=1 // loop_footer_branch
      %17 = sbr.rel target = $region3
    $region8: #{tpu_custom_call.1} parent=1 // loop_exit
      _
    %488 = vsyncpa [#allocation4], 1
    %s489 = scalar_lea.sflag [#allocation4], 1
    %490 = vsyncpa %s489, 1
    %491 = vsyncpa [#allocation7], 1
    %492 = vsyncpa [#allocation5], 1
    %s493 = scalar_lea.sflag [#allocation5], 1
    %494 = vsyncpa %s493, 1

</llo_original>
